<compile_context>
chip_gen: v7x
topology: tpu7x:2x2x1
jax: 0.10.0
libtpu: 0.0.40
codegen_flags: <defaults>
</compile_context>

<pallas_src>
import jax
import jax.numpy as jnp
from jax.experimental import pallas as pl
from jax.experimental.pallas import tpu as pltpu


def channels_attention_kernel(x_ref, w1_ref, b1_ref, w2_ref, out_ref):
    # x_ref  : (tb, L, D)   batch tile of the input (native dtype)
    # w1_ref : (D, V*C)     all channels' context_matrix weights (bf16)
    # b1_ref : (1, V*C)     all channels' context_matrix biases (f32)
    # w2_ref : (V*C, V)     block-diagonal context_vector weights (bf16)
    # out_ref: (tb, V*D)    lane-dense packed output (reshaped in wrapper)
    tb, L, D = x_ref.shape
    V = w2_ref.shape[1]

    x = x_ref[...]                                   # (tb, L, D)
    x32 = x.astype(jnp.float32)
    # Free reshape while L is a multiple of the sublane count (8 f32 / 16 bf16).
    xf = x.reshape(tb * L, D).astype(w1_ref.dtype)   # bf16 MXU operand

    # Fused per-channel Linear: one MXU matmul for all V channels, f32 accum.
    u = jnp.dot(xf, w1_ref[...], preferred_element_type=jnp.float32)
    u = u + b1_ref[...]                              # (tb*L, V*C), f32
    # tanh on bf16: bf16 EUP path on v6e/v7x (upconverted on v5e, still
    # correct) and feeds the bf16 score matmul directly.
    u = jnp.tanh(u.astype(jnp.bfloat16))

    # Per-channel context-vector scores via one block-diagonal bf16 matmul.
    # TODO(synk): for large V replace with a segmented lane reduce (the
    # block-diagonal does V x redundant MACs and only uses V MXU columns).
    scores = jnp.dot(u, w2_ref[...], preferred_element_type=jnp.float32)
    scores = scores.reshape(tb, L, V)

    # Numerically stable softmax over the length axis (PyTorch Softmax(dim=1)).
    m = jnp.max(scores, axis=1, keepdims=True)       # (tb, 1, V)
    e = jnp.exp(scores - m)                          # (tb, L, V)
    denom = jnp.sum(e, axis=1, keepdims=True)        # (tb, 1, V)
    alpha = e * pl.reciprocal(denom, approx=True)    # EUP reciprocal

    # Weighted sum over L on the VPU (avoids tb tiny degenerate MXU matmuls);
    # V is small & static -> unrolled; per-channel results are concatenated
    # along lanes so the store is a single lane-dense (tb, V*D) write.
    cols = []
    for v in range(V):
        wv = alpha[:, :, v:v + 1] * x32              # (tb, L, D), exact f32
        cols.append(jnp.sum(wv, axis=1))             # (tb, D)
    out = jnp.concatenate(cols, axis=-1)             # (tb, V*D)
    out_ref[...] = out.astype(out_ref.dtype)


def _pick_block_b(B, L, D, C, V, x_itemsize):
    """Batch-tile size: large enough to hide the ~0.35us/step pipeline
    overhead, small enough to fit comfortably in v7x's 64 MiB VMEM."""
    # Rough per-batch-row live VMEM footprint (bytes).
    per_row = (
        2 * L * D * x_itemsize      # x tile, double-buffered
        + L * D * 2                 # bf16 copy of the x rows
        + L * V * C * (4 + 2)       # u in f32 + bf16
        + 3 * L * V * 4             # scores / exp / alpha
        + L * D * 4                 # per-channel weighted tile (reused)
        + 2 * V * D * x_itemsize    # packed output tile, double-buffered
    )
    vmem_budget = 24 << 20                                 # << 64 MiB physical
    x_tile_target = max(1, (2 << 20) // (L * D * x_itemsize))  # ~2 MiB of x
    bb = max(1, min(vmem_budget // per_row, x_tile_target))
    if bb >= B:
        if B >= 16:
            # Keep >= 2 grid steps so the "parallel" batch axis can shard
            # across v7x's two TensorCores; stay a multiple of 8 (sublanes).
            bb = ((pl.cdiv(B, 2) + 7) // 8) * 8
        else:
            bb = B          # full-dim block (also satisfies the (8,128) rule)
    else:
        bb = max(8, bb - (bb % 8))
    return min(bb, B)


def channels_attention(x, w1, b1, w2, *, block_b=None, mxu_dtype=jnp.bfloat16):
    """x: (B, L, D); w1: (V, D, C); b1: (V, C); w2: (V, C) -> (B, V, D)."""
    B, L, D = x.shape
    V, _, C = w1.shape

    # Pack weights once (cheap XLA ops in the wrapper, not per grid step).
    #   w1p[d, v*C + c] = w1[v, d, c]
    w1p = jnp.transpose(w1, (1, 0, 2)).reshape(D, V * C).astype(mxu_dtype)
    b1p = b1.reshape(1, V * C).astype(jnp.float32)
    #   block-diagonal: w2bd[v*C + c, v] = w2[v, c]
    eye = jnp.eye(V, dtype=w2.dtype)
    w2bd = (w2[:, :, None] * eye[:, None, :]).reshape(V * C, V).astype(mxu_dtype)

    if block_b is None:
        block_b = _pick_block_b(B, L, D, C, V, x.dtype.itemsize)
    grid = (pl.cdiv(B, block_b),)

    out_packed = pl.pallas_call(
        channels_attention_kernel,
        out_shape=jax.ShapeDtypeStruct((B, V * D), x.dtype),
        grid=grid,
        in_specs=[
            # x tiled over batch; last two dims equal full array dims.
            pl.BlockSpec((block_b, L, D), lambda b: (b, 0, 0)),
            # Weights: full untiled blocks, constant index_map (fetched once).
            pl.BlockSpec((D, V * C), lambda b: (0, 0)),
            pl.BlockSpec((1, V * C), lambda b: (0, 0)),
            pl.BlockSpec((V * C, V), lambda b: (0, 0)),
        ],
        out_specs=pl.BlockSpec((block_b, V * D), lambda b: (b, 0)),
        compiler_params=pltpu.CompilerParams(
            dimension_semantics=("parallel",),
            # Raise the scoped limit above v5e/v6e defaults (16/32 MiB) so the
            # large tile fits; stay below v7x's 64 MiB physical VMEM.
            vmem_limit_bytes=48 << 20,
        ),
    )(x, w1p, b1p, w2bd)

    return out_packed.reshape(B, V, D)


def reference(x, w1, b1, w2):
    # Pure-JAX (f32) reference mirroring the PyTorch forward.
    outs = []
    V = w1.shape[0]
    for v in range(V):
        u = jnp.tanh(jnp.einsum('bld,dc->blc', x, w1[v]) + b1[v])
        scores = jnp.einsum('blc,c->bl', u, w2[v])
        alpha = jax.nn.softmax(scores, axis=1)[:, :, None]
        outs.append(jnp.sum(x * alpha, axis=1)[:, None, :])
    return jnp.concatenate(outs, axis=1)


if __name__ == "__main__":
    # Small shapes consistent with the module's forward:
    #   batch=2, sequence length=8, input_dim=32, context_size=32, V=4
    B, L, D, C, V = 2, 8, 32, 32, 4

    key = jax.random.PRNGKey(0)
    kx, kw1, kb1, kw2 = jax.random.split(key, 4)

    x = jax.random.normal(kx, (B, L, D), dtype=jnp.float32)
    # nn.Linear shapes, stacked over V:
    #   context_matrix: weight (C, D) stored transposed as (D, C); bias (C,)
    #   context_vector: weight (1, C) stored as (C,); no bias
    w1 = jax.random.normal(kw1, (V, D, C), dtype=jnp.float32) * 0.1
    b1 = jax.random.normal(kb1, (V, C), dtype=jnp.float32) * 0.1
    w2 = jax.random.normal(kw2, (V, C), dtype=jnp.float32) * 0.1

    out = jax.block_until_ready(channels_attention(x, w1, b1, w2))
    ref = reference(x, w1, b1, w2)
    assert out.shape == (B, V, D)
    # Tolerance covers the bf16 MXU/tanh path and pl.reciprocal(approx=True);
    # the weighted sum over L and softmax normalization stay in f32.
    assert jnp.allclose(out, ref, atol=3e-2, rtol=3e-2), "mismatch vs reference"

    # Second small check: multi-step grid + partial trailing batch block
    # (exercises the >=2-step tiling path used for larger batches).
    B2 = 20
    x2 = jax.random.normal(jax.random.PRNGKey(1), (B2, L, D), dtype=jnp.float32)
    out2 = jax.block_until_ready(channels_attention(x2, w1, b1, w2))
    ref2 = reference(x2, w1, b1, w2)
    assert out2.shape == (B2, V, D)
    assert jnp.allclose(out2, ref2, atol=3e-2, rtol=3e-2), "mismatch (tiled)"

    print("KERNEL_OK")
</pallas_src>

<mosaic_0001>
module attributes {stable_mosaic.version = 11 : i64} {
  func.func @channels_attention_kernel(%arg0: i32, %arg1: memref<2x8x32xf32, #tpu.memory_space<vmem>>, %arg2: memref<32x128xbf16, #tpu.memory_space<vmem>>, %arg3: memref<1x128xf32, #tpu.memory_space<vmem>>, %arg4: memref<128x4xbf16, #tpu.memory_space<vmem>>, %arg5: memref<2x128xf32, #tpu.memory_space<vmem>>) attributes {dimension_semantics = [#tpu.dimension_semantics<parallel>], iteration_bounds = array<i64: 1>, scalar_prefetch = 0 : i64, scratch_operands = 0 : i64, tpu.core_type = #tpu.core_type<tc>, window_params = [{transform_indices = @transform_0, window_bounds = array<i64: 2, 8, 32>}, {pipeline_mode = #tpu.pipeline_mode<synchronous>, transform_indices = @transform_1, window_bounds = array<i64: 32, 128>}, {pipeline_mode = #tpu.pipeline_mode<synchronous>, transform_indices = @transform_2, window_bounds = array<i64: 1, 128>}, {pipeline_mode = #tpu.pipeline_mode<synchronous>, transform_indices = @transform_3, window_bounds = array<i64: 128, 4>}, {transform_indices = @transform_4, window_bounds = array<i64: 2, 128>}]} {
    %c0 = arith.constant 0 : index
    %c0_0 = arith.constant 0 : index
    %c0_1 = arith.constant 0 : index
    %0 = vector.load %arg1[%c0, %c0_0, %c0_1] : memref<2x8x32xf32, #tpu.memory_space<vmem>>, vector<2x8x32xf32>
    %1 = vector.shape_cast %0 : vector<2x8x32xf32> to vector<16x32xf32>
    %2 = arith.truncf %1 : vector<16x32xf32> to vector<16x32xbf16>
    %c0_2 = arith.constant 0 : index
    %c0_3 = arith.constant 0 : index
    %3 = vector.load %arg2[%c0_2, %c0_3] : memref<32x128xbf16, #tpu.memory_space<vmem>>, vector<32x128xbf16>
    %cst = arith.constant dense<0.000000e+00> : vector<16x128xf32>
    %4 = tpu.matmul %2, %3, %cst {dimension_numbers = #tpu.dot_dimension_numbers<[1], [0], [0], [1], [0, 0, 1, 1], [], []>} : vector<16x32xbf16>, vector<32x128xbf16>, vector<16x128xf32> -> vector<16x128xf32>
    %c0_4 = arith.constant 0 : index
    %c0_5 = arith.constant 0 : index
    %5 = vector.load %arg3[%c0_4, %c0_5] : memref<1x128xf32, #tpu.memory_space<vmem>>, vector<1x128xf32>
    %6 = vector.broadcast %5 : vector<1x128xf32> to vector<16x128xf32>
    %7 = arith.addf %4, %6 : vector<16x128xf32>
    %8 = arith.truncf %7 : vector<16x128xf32> to vector<16x128xbf16>
    %9 = math.tanh %8 : vector<16x128xbf16>
    %c0_6 = arith.constant 0 : index
    %c0_7 = arith.constant 0 : index
    %10 = vector.load %arg4[%c0_6, %c0_7] : memref<128x4xbf16, #tpu.memory_space<vmem>>, vector<128x4xbf16>
    %cst_8 = arith.constant dense<0.000000e+00> : vector<16x4xf32>
    %11 = tpu.matmul %9, %10, %cst_8 {dimension_numbers = #tpu.dot_dimension_numbers<[1], [0], [0], [1], [0, 0, 1, 1], [], []>} : vector<16x128xbf16>, vector<128x4xbf16>, vector<16x4xf32> -> vector<16x4xf32>
    %12 = vector.shape_cast %11 : vector<16x4xf32> to vector<2x8x4xf32>
    %cst_9 = arith.constant dense<0xFF800000> : vector<2x4xf32>
    %13 = vector.multi_reduction <maximumf>, %12, %cst_9 [1] : vector<2x8x4xf32> to vector<2x4xf32>
    %14 = vector.shape_cast %13 : vector<2x4xf32> to vector<2x1x4xf32>
    %15 = vector.broadcast %14 : vector<2x1x4xf32> to vector<2x8x4xf32>
    %16 = arith.subf %12, %15 : vector<2x8x4xf32>
    %17 = math.exp %16 : vector<2x8x4xf32>
    %cst_10 = arith.constant dense<0.000000e+00> : vector<2x4xf32>
    %18 = vector.multi_reduction <add>, %17, %cst_10 [1] : vector<2x8x4xf32> to vector<2x4xf32>
    %19 = vector.shape_cast %18 : vector<2x4xf32> to vector<2x1x4xf32>
    %20 = tpu.reciprocal %19 {approx = true} : vector<2x1x4xf32> -> vector<2x1x4xf32>
    %21 = vector.broadcast %20 : vector<2x1x4xf32> to vector<2x8x4xf32>
    %22 = arith.mulf %17, %21 : vector<2x8x4xf32>
    %23 = vector.extract_strided_slice %22 {offsets = [0, 0, 0], sizes = [2, 8, 1], strides = [1, 1, 1]} : vector<2x8x4xf32> to vector<2x8x1xf32>
    %24 = vector.broadcast %23 : vector<2x8x1xf32> to vector<2x8x32xf32>
    %25 = arith.mulf %24, %0 : vector<2x8x32xf32>
    %cst_11 = arith.constant dense<0.000000e+00> : vector<2x32xf32>
    %26 = vector.multi_reduction <add>, %25, %cst_11 [1] : vector<2x8x32xf32> to vector<2x32xf32>
    %27 = vector.extract_strided_slice %22 {offsets = [0, 0, 1], sizes = [2, 8, 1], strides = [1, 1, 1]} : vector<2x8x4xf32> to vector<2x8x1xf32>
    %28 = vector.broadcast %27 : vector<2x8x1xf32> to vector<2x8x32xf32>
    %29 = arith.mulf %28, %0 : vector<2x8x32xf32>
    %cst_12 = arith.constant dense<0.000000e+00> : vector<2x32xf32>
    %30 = vector.multi_reduction <add>, %29, %cst_12 [1] : vector<2x8x32xf32> to vector<2x32xf32>
    %31 = vector.extract_strided_slice %22 {offsets = [0, 0, 2], sizes = [2, 8, 1], strides = [1, 1, 1]} : vector<2x8x4xf32> to vector<2x8x1xf32>
    %32 = vector.broadcast %31 : vector<2x8x1xf32> to vector<2x8x32xf32>
    %33 = arith.mulf %32, %0 : vector<2x8x32xf32>
    %cst_13 = arith.constant dense<0.000000e+00> : vector<2x32xf32>
    %34 = vector.multi_reduction <add>, %33, %cst_13 [1] : vector<2x8x32xf32> to vector<2x32xf32>
    %35 = vector.extract_strided_slice %22 {offsets = [0, 0, 3], sizes = [2, 8, 1], strides = [1, 1, 1]} : vector<2x8x4xf32> to vector<2x8x1xf32>
    %36 = vector.broadcast %35 : vector<2x8x1xf32> to vector<2x8x32xf32>
    %37 = arith.mulf %36, %0 : vector<2x8x32xf32>
    %cst_14 = arith.constant dense<0.000000e+00> : vector<2x32xf32>
    %38 = vector.multi_reduction <add>, %37, %cst_14 [1] : vector<2x8x32xf32> to vector<2x32xf32>
    %39 = tpu.concatenate %26, %30, %34, %38 in 1 : vector<2x32xf32>, vector<2x32xf32>, vector<2x32xf32>, vector<2x32xf32> -> vector<2x128xf32>
    %c0_15 = arith.constant 0 : index
    %c0_16 = arith.constant 0 : index
    %40 = vector.load %arg5[%c0_15, %c0_16] : memref<2x128xf32, #tpu.memory_space<vmem>>, vector<2x128xf32>
    tpu.vector_store %arg5[%c0_15, %c0_16], %39 {strides = array<i32>} : memref<2x128xf32, #tpu.memory_space<vmem>>, vector<2x128xf32>,
    return
  }
  func.func @transform_0(%arg0: i32) -> (i32, i32, i32) {
    %c0_i32 = arith.constant 0 : i32
    %c0_i32_0 = arith.constant 0 : i32
    %c0_i32_1 = arith.constant 0 : i32
    return %arg0, %c0_i32, %c0_i32_0 : i32, i32, i32
  }
  func.func @transform_1(%arg0: i32) -> (i32, i32) {
    %c0_i32 = arith.constant 0 : i32
    %c0_i32_0 = arith.constant 0 : i32
    %c0_i32_1 = arith.constant 0 : i32
    return %c0_i32, %c0_i32_0 : i32, i32
  }
  func.func @transform_2(%arg0: i32) -> (i32, i32) {
    %c0_i32 = arith.constant 0 : i32
    %c0_i32_0 = arith.constant 0 : i32
    %c0_i32_1 = arith.constant 0 : i32
    return %c0_i32, %c0_i32_0 : i32, i32
  }
  func.func @transform_3(%arg0: i32) -> (i32, i32) {
    %c0_i32 = arith.constant 0 : i32
    %c0_i32_0 = arith.constant 0 : i32
    %c0_i32_1 = arith.constant 0 : i32
    return %c0_i32, %c0_i32_0 : i32, i32
  }
  func.func @transform_4(%arg0: i32) -> (i32, i32) {
    %c0_i32 = arith.constant 0 : i32
    %c0_i32_0 = arith.constant 0 : i32
    return %arg0, %c0_i32 : i32, i32
  }
}

</mosaic_0001>

<llo_original>
// kernel: tpu_custom_call.1
$region0: #{tpu_custom_call.1}
  #allocation0 [shape = 'u32[]', space=smem, size = 0x4, offset = 0x4, fixed_abs, tag = 'smem constant byte address 0x4 - core index']
  #allocation1 [shape = 'u32[144,128]{1,0:T(1,128)}', space=vmem, size = 0x12000, scoped, tag = 'internal scratch']
  %s0 = inlined_call_operand.vmem [shape: f32[2,8,32], index: 0, kind: input, shape index: {}]
  %s1 = inlined_call_operand.vmem [shape: bf16[32,128], index: 1, kind: input, shape index: {}]
  %s2 = inlined_call_operand.vmem [shape: f32[1,128], index: 2, kind: input, shape index: {}]
  %s3 = inlined_call_operand.vmem [shape: bf16[128,4], index: 3, kind: input, shape index: {}]
  %s4 = inlined_call_operand.hbm [shape: f32[2,128], index: 4, kind: output, shape index: {}]
  %s5 = sld [smem:[#allocation0]]
  $region26: #{tpu_custom_call.1} parent=0
    _
  %s7 = ssub.s32 1, %s5
  %s8 = scalar_select 0, %s7, %s5
  $region1: #{tpu_custom_call.1} parent=0
    #allocation2 [shape = 'u8[1024]{0}', space=vmem, size = 0x400, scoped, tag = 'output window, operand 0, single buffered']
    #allocation3 [shape = 's32[1]{0}', space=sflag, size = 0x4, scoped, tag = 'scoped memory for tpu_custom_call.1']
    %9 = vsyncpa [#allocation3], 0
    // Predicated region
    $region2: #{tpu_custom_call.1} parent=1 // pred_check
      _
    $region3: #{tpu_custom_call.1} parent=1 // pred_check_branch
      %11 = sbr.rel (0) target = $region5
    $region4: #{tpu_custom_call.1} parent=1 // pred_region
      _
    $region5: #{tpu_custom_call.1} parent=1 // pred_fallthru
      _
    // Predicated region
    $region6: #{tpu_custom_call.1} parent=1 // pred_check
      _
    $region7: #{tpu_custom_call.1} parent=1 // pred_check_branch
      %13 = sbr.rel (0) target = $region9
    $region8: #{tpu_custom_call.1} parent=1 // pred_region
      _
    $region9: #{tpu_custom_call.1} parent=1 // pred_fallthru
      _
    // Predicated region
    $region10: #{tpu_custom_call.1} parent=1 // pred_check
      _
    $region11: #{tpu_custom_call.1} parent=1 // pred_check_branch
      %15 = sbr.rel (0) target = $region13
    $region12: #{tpu_custom_call.1} parent=1 // pred_region
      _
    $region13: #{tpu_custom_call.1} parent=1 // pred_fallthru
      _
    // Predicated region
    $region14: #{tpu_custom_call.1} parent=1 // pred_check
      _
    $region15: #{tpu_custom_call.1} parent=1 // pred_check_branch
      %17 = sbr.rel (0) target = $region17
    $region16: #{tpu_custom_call.1} parent=1 // pred_region
      _
    $region17: #{tpu_custom_call.1} parent=1 // pred_fallthru
      _
    %v19 = vld [vmem:[%s0] sm:$0xff]
    %v20 = vld [vmem:[%s0 + $0x8] sm:$0xff]
    %v21 = vpack.c.bf16 %v20, %v19
    %v22 = vld [vmem:[%s1] sm:$0xf]
    %v23 = vld [vmem:[%s1 + $0x4] sm:$0xf]
    %v24 = vld [vmem:[%s1 + $0x8] sm:$0xf]
    %v25 = vld [vmem:[%s1 + $0xc] sm:$0xf]
    %v26 = vld [vmem:[%s2] sm:$0x1]
    %v28 = vlaneseq
    %v29 = vshrl.u32 %v28, 7
    %v30 = vsub.s32 0, %v29
    %v31 = vrot.slane %v26, %v30
    %v37 = vunpack.c.l.b16 %v22
    %v38 = vunpack.c.l.b16 %v23
    %v39 = vunpack.c.l.b16 %v24
    %v40 = vunpack.c.l.b16 %v25
    %v41 = vpack.c.b16 %v38, %v37
    %v42 = vpack.c.b16 %v40, %v39
    %vm45 = vcmask 261120
    %v47 = vsel %vm45, %v21, 0
    %49 = vmatprep.subr.bf16.mxu0 0
    %50 = vmatpush1.bf16.msra.mxu0 %v41
    %51 = vmatprep.subr.bf16.mxu0 0
    %52 = vmatpush1.bf16.msra.mxu0 %v42
    %53 = vmatprep.subr.bf16.mxu0 0
    %54 = vmatpush1.bf16.msra.mxu0 0
    %55 = vmatprep.subr.bf16.mxu0 0
    %56 = vmatpush1.bf16.msra.mxu0 0
    %57 = vmatprep.subr.bf16.mxu0 0
    %58 = vmatpush1.bf16.msra.mxu0 0
    %59 = vmatprep.subr.bf16.mxu0 0
    %60 = vmatpush1.bf16.msra.mxu0 0
    %61 = vmatprep.subr.bf16.mxu0 0
    %62 = vmatpush1.bf16.msra.mxu0 0
    %63 = vmatprep.subr.bf16.mxu0 0
    %64 = vmatpush1.bf16.msra.mxu0 0
    %65 = vmatprep.subr.bf16.mxu0 0
    %66 = vmatpush1.bf16.msra.mxu0 0
    %67 = vmatprep.subr.bf16.mxu0 0
    %68 = vmatpush1.bf16.msra.mxu0 0
    %69 = vmatprep.subr.bf16.mxu0 0
    %70 = vmatpush1.bf16.msra.mxu0 0
    %71 = vmatprep.subr.bf16.mxu0 0
    %72 = vmatpush1.bf16.msra.mxu0 0
    %73 = vmatprep.subr.bf16.mxu0 0
    %74 = vmatpush1.bf16.msra.mxu0 0
    %75 = vmatprep.subr.bf16.mxu0 0
    %76 = vmatpush1.bf16.msra.mxu0 0
    %77 = vmatprep.subr.bf16.mxu0 0
    %78 = vmatpush1.bf16.msra.mxu0 0
    %79 = vmatprep.subr.bf16.mxu0 0
    %80 = vmatpush1.bf16.msra.mxu0 0
    %81 = vmatprep.mubr.bf16.mxu0 0
    %82 = vmatmul.mubr.bf16.gmra.mrb[0].mxu0 %v47
    %v83 = vpop.f32.mrb[0].mxu0
    %v84 = vadd.f32 %v31, %v83
    %v85 = vpop.f32.mrb[0].mxu0
    %v86 = vpop.f32.mrb[0].mxu0
    %v87 = vadd.f32 %v31, %v86
    %v88 = vpop.f32.mrb[0].mxu0
    %89 = vdwg.mxu0
    %v90 = vpack.c.bf16 %v87, %v84
    %v91 = vtanh.bf16.pop %v90
    %v92 = vld [vmem:[%s3] sm:$0xf]
    %v93 = vld [vmem:[%s3 + $0x4] sm:$0xf]
    %v94 = vld [vmem:[%s3 + $0x8] sm:$0xf]
    %v95 = vld [vmem:[%s3 + $0xc] sm:$0xf]
    %v96 = vld [vmem:[%s3 + $0x10] sm:$0xf]
    %v97 = vld [vmem:[%s3 + $0x14] sm:$0xf]
    %v98 = vld [vmem:[%s3 + $0x18] sm:$0xf]
    %v99 = vld [vmem:[%s3 + $0x1c] sm:$0xf]
    %v100 = vld [vmem:[%s3 + $0x20] sm:$0xf]
    %v101 = vld [vmem:[%s3 + $0x24] sm:$0xf]
    %v102 = vld [vmem:[%s3 + $0x28] sm:$0xf]
    %v103 = vld [vmem:[%s3 + $0x2c] sm:$0xf]
    %v104 = vld [vmem:[%s3 + $0x30] sm:$0xf]
    %v105 = vld [vmem:[%s3 + $0x34] sm:$0xf]
    %v106 = vld [vmem:[%s3 + $0x38] sm:$0xf]
    %v107 = vld [vmem:[%s3 + $0x3c] sm:$0xf]
    %v124 = vunpack.c.l.b16 %v92
    %v125 = vunpack.c.l.b16 %v93
    %v126 = vunpack.c.l.b16 %v94
    %v127 = vunpack.c.l.b16 %v95
    %v128 = vunpack.c.l.b16 %v96
    %v129 = vunpack.c.l.b16 %v97
    %v130 = vunpack.c.l.b16 %v98
    %v131 = vunpack.c.l.b16 %v99
    %v132 = vunpack.c.l.b16 %v100
    %v133 = vunpack.c.l.b16 %v101
    %v134 = vunpack.c.l.b16 %v102
    %v135 = vunpack.c.l.b16 %v103
    %v136 = vunpack.c.l.b16 %v104
    %v137 = vunpack.c.l.b16 %v105
    %v138 = vunpack.c.l.b16 %v106
    %v139 = vunpack.c.l.b16 %v107
    %v140 = vpack.c.b16 %v125, %v124
    %v141 = vpack.c.b16 %v127, %v126
    %v142 = vpack.c.b16 %v129, %v128
    %v143 = vpack.c.b16 %v131, %v130
    %v144 = vpack.c.b16 %v133, %v132
    %v145 = vpack.c.b16 %v135, %v134
    %v146 = vpack.c.b16 %v137, %v136
    %v147 = vpack.c.b16 %v139, %v138
    %156 = vmatprep.subr.bf16.mxu0 0
    %157 = vmatpush1.bf16.msra.mxu0 %v140
    %158 = vmatprep.subr.bf16.mxu0 0
    %159 = vmatpush1.bf16.msra.mxu0 %v141
    %160 = vmatprep.subr.bf16.mxu0 0
    %161 = vmatpush1.bf16.msra.mxu0 %v142
    %162 = vmatprep.subr.bf16.mxu0 0
    %163 = vmatpush1.bf16.msra.mxu0 %v143
    %164 = vmatprep.subr.bf16.mxu0 0
    %165 = vmatpush1.bf16.msra.mxu0 %v144
    %166 = vmatprep.subr.bf16.mxu0 0
    %167 = vmatpush1.bf16.msra.mxu0 %v145
    %168 = vmatprep.subr.bf16.mxu0 0
    %169 = vmatpush1.bf16.msra.mxu0 %v146
    %170 = vmatprep.subr.bf16.mxu0 0
    %171 = vmatpush1.bf16.msra.mxu0 %v147
    %172 = vmatprep.subr.bf16.mxu0 0
    %173 = vmatpush1.bf16.msra.mxu0 0
    %174 = vmatprep.subr.bf16.mxu0 0
    %175 = vmatpush1.bf16.msra.mxu0 0
    %176 = vmatprep.subr.bf16.mxu0 0
    %177 = vmatpush1.bf16.msra.mxu0 0
    %178 = vmatprep.subr.bf16.mxu0 0
    %179 = vmatpush1.bf16.msra.mxu0 0
    %180 = vmatprep.subr.bf16.mxu0 0
    %181 = vmatpush1.bf16.msra.mxu0 0
    %182 = vmatprep.subr.bf16.mxu0 0
    %183 = vmatpush1.bf16.msra.mxu0 0
    %184 = vmatprep.subr.bf16.mxu0 0
    %185 = vmatpush1.bf16.msra.mxu0 0
    %186 = vmatprep.subr.bf16.mxu0 0
    %187 = vmatpush1.bf16.msra.mxu0 0
    %188 = vmatprep.mubr.bf16.mxu0 0
    %189 = vmatmul.mubr.bf16.gmra.mrb[0].mxu0 %v91
    %v190 = vpop.f32.mrb[0].mxu0
    %v191 = vadd.f32 0.0, %v190
    %v192 = vpop.f32.mrb[0].mxu0
    %v193 = vpop.f32.mrb[0].mxu0
    %v194 = vadd.f32 0.0, %v193
    %v195 = vpop.f32.mrb[0].mxu0
    %196 = vdwg.mxu0
    %vm197 = vcmask 31744
    %v198 = vsel %vm197, %v191, -inf
    %v199 = vrot.slane %v198, 4
    %v200 = vmax.f32 %v198, %v199
    %v201 = vrot.slane %v200, 2
    %v202 = vmax.f32 %v200, %v201
    %v203 = vrot.slane %v202, 1
    %v204 = vmax.f32 %v202, %v203
    %v205 = vsel %vm197, %v194, -inf
    %v206 = vrot.slane %v205, 4
    %v207 = vmax.f32 %v205, %v206
    %v208 = vrot.slane %v207, 2
    %v209 = vmax.f32 %v207, %v208
    %v210 = vrot.slane %v209, 1
    %v211 = vmax.f32 %v209, %v210
    %v212 = vsub.f32 %v191, %v204
    %v213 = vsub.f32 %v194, %v211
    %v214 = vmul.f32 %v212, 1.442695
    %v215 = vpow.pop %v214
    %v216 = vmul.f32 %v213, 1.442695
    %v217 = vpow.pop %v216
    %v218 = vsel %vm197, %v215, 0.0
    %v219 = vrot.slane %v218, 4
    %v220 = vadd.f32 %v218, %v219
    %v221 = vrot.slane %v220, 2
    %v222 = vadd.f32 %v220, %v221
    %v223 = vrot.slane %v222, 1
    %v224 = vadd.f32 %v222, %v223
    %v225 = vsel %vm197, %v217, 0.0
    %v226 = vrot.slane %v225, 4
    %v227 = vadd.f32 %v225, %v226
    %v228 = vrot.slane %v227, 2
    %v229 = vadd.f32 %v227, %v228
    %v230 = vrot.slane %v229, 1
    %v231 = vadd.f32 %v229, %v230
    %v232 = vrcp.pop %v224
    %v233 = vrcp.pop %v231
    %v234 = vmul.f32 %v215, %v232
    %v235 = vmul.f32 %v217, %v233
    %237 = vset.pattern.permute.xlu0 0
    %238 = vperm.xlu0 %237, %v234
    %v239 = vpop.permute.xlu0 %238
    %242 = vset.pattern.permute.xlu0 0
    %243 = vperm.xlu0 %242, %v235
    %v244 = vpop.permute.xlu0 %243
    %v246 = vmul.f32 %v239, %v19
    %v247 = vmul.f32 %v244, %v20
    %v248 = vsel %vm45, %v246, 0.0
    %v249 = vrot.slane %v248, 4
    %v250 = vadd.f32 %v248, %v249
    %v251 = vrot.slane %v250, 2
    %v252 = vadd.f32 %v250, %v251
    %v253 = vrot.slane %v252, 1
    %v254 = vadd.f32 %v252, %v253
    %v255 = vsel %vm45, %v247, 0.0
    %v256 = vrot.slane %v255, 4
    %v257 = vadd.f32 %v255, %v256
    %v258 = vrot.slane %v257, 2
    %v259 = vadd.f32 %v257, %v258
    %v260 = vrot.slane %v259, 1
    %v261 = vadd.f32 %v259, %v260
    %262 = vset.pattern.permute.xlu0 1
    %263 = vperm.xlu0 %262, %v234
    %v264 = vpop.permute.xlu0 %263
    %266 = vset.pattern.permute.xlu0 1
    %267 = vperm.xlu0 %266, %v235
    %v268 = vpop.permute.xlu0 %267
    %v270 = vmul.f32 %v264, %v19
    %v271 = vmul.f32 %v268, %v20
    %v272 = vsel %vm45, %v270, 0.0
    %v273 = vrot.slane %v272, 4
    %v274 = vadd.f32 %v272, %v273
    %v275 = vrot.slane %v274, 2
    %v276 = vadd.f32 %v274, %v275
    %v277 = vrot.slane %v276, 1
    %v278 = vadd.f32 %v276, %v277
    %v279 = vsel %vm45, %v271, 0.0
    %v280 = vrot.slane %v279, 4
    %v281 = vadd.f32 %v279, %v280
    %v282 = vrot.slane %v281, 2
    %v283 = vadd.f32 %v281, %v282
    %v284 = vrot.slane %v283, 1
    %v285 = vadd.f32 %v283, %v284
    %286 = vset.pattern.permute.xlu0 2
    %287 = vperm.xlu0 %286, %v234
    %v288 = vpop.permute.xlu0 %287
    %290 = vset.pattern.permute.xlu0 2
    %291 = vperm.xlu0 %290, %v235
    %v292 = vpop.permute.xlu0 %291
    %v294 = vmul.f32 %v288, %v19
    %v295 = vmul.f32 %v292, %v20
    %v296 = vsel %vm45, %v294, 0.0
    %v297 = vrot.slane %v296, 4
    %v298 = vadd.f32 %v296, %v297
    %v299 = vrot.slane %v298, 2
    %v300 = vadd.f32 %v298, %v299
    %v301 = vrot.slane %v300, 1
    %v302 = vadd.f32 %v300, %v301
    %v303 = vsel %vm45, %v295, 0.0
    %v304 = vrot.slane %v303, 4
    %v305 = vadd.f32 %v303, %v304
    %v306 = vrot.slane %v305, 2
    %v307 = vadd.f32 %v305, %v306
    %v308 = vrot.slane %v307, 1
    %v309 = vadd.f32 %v307, %v308
    %310 = vset.pattern.permute.xlu0 3
    %311 = vperm.xlu0 %310, %v234
    %v312 = vpop.permute.xlu0 %311
    %314 = vset.pattern.permute.xlu0 3
    %315 = vperm.xlu0 %314, %v235
    %v316 = vpop.permute.xlu0 %315
    %v318 = vmul.f32 %v312, %v19
    %v319 = vmul.f32 %v316, %v20
    %v320 = vsel %vm45, %v318, 0.0
    %v321 = vrot.slane %v320, 4
    %v322 = vadd.f32 %v320, %v321
    %v323 = vrot.slane %v322, 2
    %v324 = vadd.f32 %v322, %v323
    %v325 = vrot.slane %v324, 1
    %v326 = vadd.f32 %v324, %v325
    %v327 = vsel %vm45, %v319, 0.0
    %v328 = vrot.slane %v327, 4
    %v329 = vadd.f32 %v327, %v328
    %v330 = vrot.slane %v329, 2
    %v331 = vadd.f32 %v329, %v330
    %v332 = vrot.slane %v331, 1
    %v333 = vadd.f32 %v331, %v332
    %vm336 = vcmask 1041409
    %v337 = vsel %vm336, %v261, %v254
    %v341 = vsel %vm336, %v285, %v278
    %342 = vrot.lane.b32.xlu0 %v341, 32
    %v343 = vpop.permute.xlu0 %342
    %v347 = vsel %vm336, %v309, %v302
    %348 = vrot.lane.b32.xlu0 %v347, 64
    %v349 = vpop.permute.xlu0 %348
    %v353 = vsel %vm336, %v333, %v326
    %354 = vrot.lane.b32.xlu0 %v353, 96
    %v355 = vpop.permute.xlu0 %354
    %v357 = vsel %vm45, %v337, %v343
    %vm358 = vcmask 523264
    %v359 = vsel %vm358, %v357, %v349
    %vm360 = vcmask 785408
    %v361 = vsel %vm360, %v359, %v355
    %362 = vst [vmem:[#allocation2] sm:$0x3] %v361
    // Predicated region
    $region18: #{tpu_custom_call.1} parent=1 // pred_check
      _
    $region19: #{tpu_custom_call.1} parent=1 // pred_check_branch
      %364 = sbr.rel (0) target = $region21
    $region20: #{tpu_custom_call.1} parent=1 // pred_region
      %s366 = ssub.s32 32, 32
      %367 = vsyncadd [#allocation3], %s366
      %s369 = sshll.u32 [#allocation2], 4
      %s370 = int_to_ptr.vmem [resolvable:$true] %s369
      %372 = dma.vmem_to_hbm [thread:$0]  %s370, 32, %s4, [#allocation3]
    $region21: #{tpu_custom_call.1} parent=1 // pred_fallthru
      _
    // Predicated region
    $region22: #{tpu_custom_call.1} parent=1 // pred_check
      _
    $region23: #{tpu_custom_call.1} parent=1 // pred_check_branch
      %374 = sbr.rel (0) target = $region25
    $region24: #{tpu_custom_call.1} parent=1 // pred_region
      %375 = dma.done [#allocation3], 32
    $region25: #{tpu_custom_call.1} parent=1 // pred_fallthru
      _
    %376 = vsyncpa [#allocation3], 1

</llo_original>
